<compile_context>
chip_gen: v5e
topology: v5e:2x2
jax: 0.10.0
libtpu: 0.0.40
codegen_flags: <defaults>
</compile_context>

<pallas_src>
import jax
import jax.numpy as jnp
from jax.experimental import pallas as pl
from jax.experimental.pallas import tpu as pltpu


def value_net_kernel(x_ref, w1_ref, b1_ref, w2_ref, b2_ref, w3_ref, b3_ref, o_ref):
    # x_ref : (input_dim, TB) bf16   -- batch on lanes
    # w1_ref: (128, input_dim) bf16  -- PyTorch (out, in) layout, VMEM-resident
    # w2_ref: (64, 128) bf16         -- VMEM-resident
    # b1_ref: (128, 1) f32, b2_ref: (64, 1) f32, w3_ref: (64, 1) f32
    # b3_ref: (1, 1) f32 in SMEM
    x = x_ref[...]
    h1 = jnp.dot(w1_ref[...], x, preferred_element_type=jnp.float32)        # (128, TB)
    h1 = jnp.maximum(h1 + b1_ref[...], 0.0)
    h2 = jnp.dot(w2_ref[...], h1.astype(jnp.bfloat16),
                 preferred_element_type=jnp.float32)                        # (64, TB)
    h2 = jnp.maximum(h2 + b2_ref[...], 0.0)
    # fc3 (64 -> 1): VPU multiply + sublane (XLU) reduction -> lane-dense (1, TB).
    o_ref[...] = jnp.sum(h2 * w3_ref[...], axis=0, keepdims=True) + b3_ref[0, 0]


def value_network_forward(state, w1, b1, w2, b2, w3, b3, *, tb=256):
    """state: (B, input_dim) f32. Weights in PyTorch layout: w_i is (out, in)."""
    B, input_dim = state.shape
    h1_dim = w1.shape[0]   # 128
    h2_dim = w2.shape[0]   # 64
    n_tiles = pl.cdiv(B, tb)
    b_pad = n_tiles * tb

    # Pad batch to a tile multiple and transpose so batch is the lane dimension.
    x_t = jnp.zeros((input_dim, b_pad), jnp.bfloat16)
    x_t = x_t.at[:, :B].set(state.astype(jnp.bfloat16).T)

    w1_b = w1.astype(jnp.bfloat16)
    w2_b = w2.astype(jnp.bfloat16)
    b1_c = b1.reshape(h1_dim, 1).astype(jnp.float32)
    b2_c = b2.reshape(h2_dim, 1).astype(jnp.float32)
    w3_c = w3.reshape(h2_dim, 1).astype(jnp.float32)   # fc3 weight as a column
    b3_c = b3.reshape(1, 1).astype(jnp.float32)

    flops = 2 * b_pad * (input_dim * h1_dim + h1_dim * h2_dim + h2_dim)
    bytes_accessed = (x_t.size * 2 + w1_b.size * 2 + w2_b.size * 2
                      + (b1_c.size + b2_c.size + w3_c.size + 1) * 4 + b_pad * 4)

    out = pl.pallas_call(
        value_net_kernel,
        out_shape=jax.ShapeDtypeStruct((1, b_pad), jnp.float32),
        grid=(n_tiles,),
        in_specs=[
            pl.BlockSpec((input_dim, tb), lambda i: (0, i)),      # X^T batch tile
            pl.BlockSpec((h1_dim, input_dim), lambda i: (0, 0)),  # W1 (resident)
            pl.BlockSpec((h1_dim, 1), lambda i: (0, 0)),          # b1
            pl.BlockSpec((h2_dim, h1_dim), lambda i: (0, 0)),     # W2 (resident)
            pl.BlockSpec((h2_dim, 1), lambda i: (0, 0)),          # b2
            pl.BlockSpec((h2_dim, 1), lambda i: (0, 0)),          # w3 column
            pl.BlockSpec(memory_space=pltpu.MemorySpace.SMEM),    # b3 scalar
        ],
        out_specs=pl.BlockSpec((1, tb), lambda i: (0, i)),        # lane-dense output
        compiler_params=pltpu.CompilerParams(
            dimension_semantics=("parallel",)),
        cost_estimate=pl.CostEstimate(
            flops=flops, transcendentals=0, bytes_accessed=bytes_accessed),
    )(x_t, w1_b, b1_c, w2_b, b2_c, w3_c, b3_c)

    return out[0, :B].reshape(B, 1)


def init_params(key, input_dim):
    # PyTorch-layout params: w_i is (out, in), b_i is (out,); U(-1/sqrt(fan_in), ..).
    ks = jax.random.split(key, 6)

    def lin(kw, kb, fan_in, fan_out):
        bound = 1.0 / jnp.sqrt(jnp.float32(fan_in))
        w = jax.random.uniform(kw, (fan_out, fan_in), jnp.float32, -bound, bound)
        b = jax.random.uniform(kb, (fan_out,), jnp.float32, -bound, bound)
        return w, b

    w1, b1 = lin(ks[0], ks[1], input_dim, 128)
    w2, b2 = lin(ks[2], ks[3], 128, 64)
    w3, b3 = lin(ks[4], ks[5], 64, 1)
    return w1, b1, w2, b2, w3, b3


if __name__ == "__main__":
    key = jax.random.PRNGKey(0)
    k_params, k_state = jax.random.split(key)

    batch = 8
    input_dim = 32

    w1, b1, w2, b2, w3, b3 = init_params(k_params, input_dim)
    state = jax.random.normal(k_state, (batch, input_dim), jnp.float32)

    out = value_network_forward(state, w1, b1, w2, b2, w3, b3)
    jax.block_until_ready(out)

    # Pure-JAX f32 reference (same math as the PyTorch forward: x @ W.T + b).
    ref = jnp.maximum(state @ w1.T + b1, 0.0)
    ref = jnp.maximum(ref @ w2.T + b2, 0.0)
    ref = ref @ w3.T + b3

    assert out.shape == (batch, 1)
    # bf16 operands (f32 accumulation) -> looser tolerance than the pure-f32 version.
    assert jnp.allclose(out, ref, atol=2e-2, rtol=2e-2), float(jnp.max(jnp.abs(out - ref)))

    print("KERNEL_OK")
</pallas_src>

<mosaic_0001>
module attributes {stable_mosaic.version = 11 : i64} {
  func.func @value_net_kernel(%arg0: i32, %arg1: memref<32x256xbf16, #tpu.memory_space<vmem>>, %arg2: memref<128x32xbf16, #tpu.memory_space<vmem>>, %arg3: memref<128x1xf32, #tpu.memory_space<vmem>>, %arg4: memref<64x128xbf16, #tpu.memory_space<vmem>>, %arg5: memref<64x1xf32, #tpu.memory_space<vmem>>, %arg6: memref<64x1xf32, #tpu.memory_space<vmem>>, %arg7: memref<1x1xf32, #tpu.memory_space<smem>>, %arg8: memref<1x256xf32, #tpu.memory_space<vmem>>) attributes {dimension_semantics = [#tpu.dimension_semantics<parallel>], iteration_bounds = array<i64: 1>, scalar_prefetch = 0 : i64, scratch_operands = 0 : i64, tpu.core_type = #tpu.core_type<tc>, window_params = [{transform_indices = @transform_0, window_bounds = array<i64: 32, 256>}, {pipeline_mode = #tpu.pipeline_mode<synchronous>, transform_indices = @transform_1, window_bounds = array<i64: 128, 32>}, {pipeline_mode = #tpu.pipeline_mode<synchronous>, transform_indices = @transform_2, window_bounds = array<i64: 128, 1>}, {pipeline_mode = #tpu.pipeline_mode<synchronous>, transform_indices = @transform_3, window_bounds = array<i64: 64, 128>}, {pipeline_mode = #tpu.pipeline_mode<synchronous>, transform_indices = @transform_4, window_bounds = array<i64: 64, 1>}, {pipeline_mode = #tpu.pipeline_mode<synchronous>, transform_indices = @transform_5, window_bounds = array<i64: 64, 1>}, {transform_indices = @transform_6, window_bounds = array<i64: 1, 1>}, {transform_indices = @transform_7, window_bounds = array<i64: 1, 256>}]} {
    %c0 = arith.constant 0 : index
    %c0_0 = arith.constant 0 : index
    %0 = vector.load %arg1[%c0, %c0_0] : memref<32x256xbf16, #tpu.memory_space<vmem>>, vector<32x256xbf16>
    %c0_1 = arith.constant 0 : index
    %c0_2 = arith.constant 0 : index
    %1 = vector.load %arg2[%c0_1, %c0_2] : memref<128x32xbf16, #tpu.memory_space<vmem>>, vector<128x32xbf16>
    %cst = arith.constant dense<0.000000e+00> : vector<128x256xf32>
    %2 = tpu.matmul %1, %0, %cst {dimension_numbers = #tpu.dot_dimension_numbers<[1], [0], [0], [1], [0, 0, 1, 1], [], []>} : vector<128x32xbf16>, vector<32x256xbf16>, vector<128x256xf32> -> vector<128x256xf32>
    %c0_3 = arith.constant 0 : index
    %c0_4 = arith.constant 0 : index
    %3 = vector.load %arg3[%c0_3, %c0_4] : memref<128x1xf32, #tpu.memory_space<vmem>>, vector<128x1xf32>
    %4 = vector.broadcast %3 : vector<128x1xf32> to vector<128x256xf32>
    %5 = arith.addf %2, %4 : vector<128x256xf32>
    %cst_5 = arith.constant 0.000000e+00 : f32
    %6 = vector.broadcast %cst_5 : f32 to vector<128x256xf32>
    %7 = arith.maximumf %5, %6 : vector<128x256xf32>
    %c0_6 = arith.constant 0 : index
    %c0_7 = arith.constant 0 : index
    %8 = vector.load %arg4[%c0_6, %c0_7] : memref<64x128xbf16, #tpu.memory_space<vmem>>, vector<64x128xbf16>
    %9 = arith.truncf %7 : vector<128x256xf32> to vector<128x256xbf16>
    %cst_8 = arith.constant dense<0.000000e+00> : vector<64x256xf32>
    %10 = tpu.matmul %8, %9, %cst_8 {dimension_numbers = #tpu.dot_dimension_numbers<[1], [0], [0], [1], [0, 0, 1, 1], [], []>} : vector<64x128xbf16>, vector<128x256xbf16>, vector<64x256xf32> -> vector<64x256xf32>
    %c0_9 = arith.constant 0 : index
    %c0_10 = arith.constant 0 : index
    %11 = vector.load %arg5[%c0_9, %c0_10] : memref<64x1xf32, #tpu.memory_space<vmem>>, vector<64x1xf32>
    %12 = vector.broadcast %11 : vector<64x1xf32> to vector<64x256xf32>
    %13 = arith.addf %10, %12 : vector<64x256xf32>
    %cst_11 = arith.constant 0.000000e+00 : f32
    %14 = vector.broadcast %cst_11 : f32 to vector<64x256xf32>
    %15 = arith.maximumf %13, %14 : vector<64x256xf32>
    %c0_12 = arith.constant 0 : index
    %c0_13 = arith.constant 0 : index
    %16 = vector.load %arg6[%c0_12, %c0_13] : memref<64x1xf32, #tpu.memory_space<vmem>>, vector<64x1xf32>
    %17 = vector.broadcast %16 : vector<64x1xf32> to vector<64x256xf32>
    %18 = arith.mulf %15, %17 : vector<64x256xf32>
    %cst_14 = arith.constant dense<0.000000e+00> : vector<256xf32>
    %19 = vector.multi_reduction <add>, %18, %cst_14 [0] : vector<64x256xf32> to vector<256xf32>
    %20 = vector.shape_cast %19 : vector<256xf32> to vector<1x256xf32>
    %c0_15 = arith.constant 0 : index
    %c0_16 = arith.constant 0 : index
    %21 = memref.load %arg7[%c0_15, %c0_16] : memref<1x1xf32, #tpu.memory_space<smem>>
    %22 = vector.broadcast %21 : f32 to vector<1x256xf32>
    %23 = arith.addf %20, %22 : vector<1x256xf32>
    %c0_17 = arith.constant 0 : index
    %c0_18 = arith.constant 0 : index
    %24 = vector.load %arg8[%c0_17, %c0_18] : memref<1x256xf32, #tpu.memory_space<vmem>>, vector<1x256xf32>
    tpu.vector_store %arg8[%c0_17, %c0_18], %23 {strides = array<i32>} : memref<1x256xf32, #tpu.memory_space<vmem>>, vector<1x256xf32>,
    return
  }
  func.func @transform_0(%arg0: i32) -> (i32, i32) {
    %c0_i32 = arith.constant 0 : i32
    %c0_i32_0 = arith.constant 0 : i32
    return %c0_i32, %arg0 : i32, i32
  }
  func.func @transform_1(%arg0: i32) -> (i32, i32) {
    %c0_i32 = arith.constant 0 : i32
    %c0_i32_0 = arith.constant 0 : i32
    %c0_i32_1 = arith.constant 0 : i32
    return %c0_i32, %c0_i32_0 : i32, i32
  }
  func.func @transform_2(%arg0: i32) -> (i32, i32) {
    %c0_i32 = arith.constant 0 : i32
    %c0_i32_0 = arith.constant 0 : i32
    %c0_i32_1 = arith.constant 0 : i32
    return %c0_i32, %c0_i32_0 : i32, i32
  }
  func.func @transform_3(%arg0: i32) -> (i32, i32) {
    %c0_i32 = arith.constant 0 : i32
    %c0_i32_0 = arith.constant 0 : i32
    %c0_i32_1 = arith.constant 0 : i32
    return %c0_i32, %c0_i32_0 : i32, i32
  }
  func.func @transform_4(%arg0: i32) -> (i32, i32) {
    %c0_i32 = arith.constant 0 : i32
    %c0_i32_0 = arith.constant 0 : i32
    %c0_i32_1 = arith.constant 0 : i32
    return %c0_i32, %c0_i32_0 : i32, i32
  }
  func.func @transform_5(%arg0: i32) -> (i32, i32) {
    %c0_i32 = arith.constant 0 : i32
    %c0_i32_0 = arith.constant 0 : i32
    %c0_i32_1 = arith.constant 0 : i32
    return %c0_i32, %c0_i32_0 : i32, i32
  }
  func.func @transform_6(%arg0: i32) -> (i32, i32) {
    %c0_i32 = arith.constant 0 : i32
    %c0_i32_0 = arith.constant 0 : i32
    %c0_i32_1 = arith.constant 0 : i32
    return %c0_i32, %c0_i32_0 : i32, i32
  }
  func.func @transform_7(%arg0: i32) -> (i32, i32) {
    %c0_i32 = arith.constant 0 : i32
    %c0_i32_0 = arith.constant 0 : i32
    return %c0_i32, %arg0 : i32, i32
  }
}

</mosaic_0001>

<llo_original>
// kernel: tpu_custom_call.1
$region0: #{tpu_custom_call.1}
  #allocation0 [shape = 'u32[]', space=smem, size = 0x4, offset = 0x4, fixed_abs, tag = 'smem constant byte address 0x4 - core index']
  #allocation1 [shape = 'u32[72,128]{1,0:T(1,128)}', space=vmem, size = 0x9000, scoped, tag = 'internal scratch']
  #allocation2 [shape = 'f32[1,1]{1,0:T(1,128)S(6)}', space=smem, size = 0x200, scoped, tag = 'scoped memory for tpu_custom_call.1']
  %s0 = inlined_call_operand.vmem [shape: bf16[32,256], index: 0, kind: input, shape index: {}]
  %s1 = inlined_call_operand.vmem [shape: bf16[128,32], index: 1, kind: input, shape index: {}]
  %s2 = inlined_call_operand.vmem [shape: f32[128,1], index: 2, kind: input, shape index: {}]
  %s3 = inlined_call_operand.vmem [shape: bf16[64,128], index: 3, kind: input, shape index: {}]
  %s4 = inlined_call_operand.vmem [shape: f32[64,1], index: 4, kind: input, shape index: {}]
  %s5 = inlined_call_operand.vmem [shape: f32[64,1], index: 5, kind: input, shape index: {}]
  %s6 = inlined_call_operand.<no memory space> [shape: f32[1,1], index: 6, kind: input, shape index: {}]
  %s7 = inlined_call_operand.hbm [shape: f32[1,256], index: 7, kind: output, shape index: {}]
  %s8 = sld [smem:[#allocation0]]
  $region38: #{tpu_custom_call.1} parent=0
    _
  %s10 = ssub.s32 1, %s8
  %s11 = scalar_select 0, %s10, %s8
  %12 = sst [smem:[#allocation2]] %s6
  $region1: #{tpu_custom_call.1} parent=0
    #allocation3 [shape = 'u8[1024]{0}', space=vmem, size = 0x400, scoped, tag = 'output window, operand 0, single buffered']
    #allocation4 [shape = 's32[1]{0}', space=sflag, size = 0x4, scoped, tag = 'scoped memory for tpu_custom_call.1']
    %13 = vsyncpa [#allocation4], 0
    // Predicated region
    $region2: #{tpu_custom_call.1} parent=1 // pred_check
      _
    $region3: #{tpu_custom_call.1} parent=1 // pred_check_branch
      %15 = sbr.rel (0) target = $region5
    $region4: #{tpu_custom_call.1} parent=1 // pred_region
      _
    $region5: #{tpu_custom_call.1} parent=1 // pred_fallthru
      _
    // Predicated region
    $region6: #{tpu_custom_call.1} parent=1 // pred_check
      _
    $region7: #{tpu_custom_call.1} parent=1 // pred_check_branch
      %17 = sbr.rel (0) target = $region9
    $region8: #{tpu_custom_call.1} parent=1 // pred_region
      _
    $region9: #{tpu_custom_call.1} parent=1 // pred_fallthru
      _
    // Predicated region
    $region10: #{tpu_custom_call.1} parent=1 // pred_check
      _
    $region11: #{tpu_custom_call.1} parent=1 // pred_check_branch
      %19 = sbr.rel (0) target = $region13
    $region12: #{tpu_custom_call.1} parent=1 // pred_region
      _
    $region13: #{tpu_custom_call.1} parent=1 // pred_fallthru
      _
    // Predicated region
    $region14: #{tpu_custom_call.1} parent=1 // pred_check
      _
    $region15: #{tpu_custom_call.1} parent=1 // pred_check_branch
      %21 = sbr.rel (0) target = $region17
    $region16: #{tpu_custom_call.1} parent=1 // pred_region
      _
    $region17: #{tpu_custom_call.1} parent=1 // pred_fallthru
      _
    // Predicated region
    $region18: #{tpu_custom_call.1} parent=1 // pred_check
      _
    $region19: #{tpu_custom_call.1} parent=1 // pred_check_branch
      %23 = sbr.rel (0) target = $region21
    $region20: #{tpu_custom_call.1} parent=1 // pred_region
      _
    $region21: #{tpu_custom_call.1} parent=1 // pred_fallthru
      _
    // Predicated region
    $region22: #{tpu_custom_call.1} parent=1 // pred_check
      _
    $region23: #{tpu_custom_call.1} parent=1 // pred_check_branch
      %25 = sbr.rel (0) target = $region25
    $region24: #{tpu_custom_call.1} parent=1 // pred_region
      _
    $region25: #{tpu_custom_call.1} parent=1 // pred_fallthru
      _
    // Predicated region
    $region26: #{tpu_custom_call.1} parent=1 // pred_check
      _
    $region27: #{tpu_custom_call.1} parent=1 // pred_check_branch
      %27 = sbr.rel (0) target = $region29
    $region28: #{tpu_custom_call.1} parent=1 // pred_region
      _
    $region29: #{tpu_custom_call.1} parent=1 // pred_fallthru
      _
    %v29 = vld [vmem:[%s0] sm:$0xff]
    %v30 = vld [vmem:[%s0 + $0x8] sm:$0xff]
    %v31 = vld [vmem:[%s0 + $0x10] sm:$0xff]
    %v32 = vld [vmem:[%s0 + $0x18] sm:$0xff]
    %v33 = vld [vmem:[%s1] sm:$0xf]
    %v34 = vld [vmem:[%s1 + $0x4] sm:$0xf]
    %v35 = vld [vmem:[%s1 + $0x8] sm:$0xf]
    %v36 = vld [vmem:[%s1 + $0xc] sm:$0xf]
    %v37 = vld [vmem:[%s1 + $0x10] sm:$0xf]
    %v38 = vld [vmem:[%s1 + $0x14] sm:$0xf]
    %v39 = vld [vmem:[%s1 + $0x18] sm:$0xf]
    %v40 = vld [vmem:[%s1 + $0x1c] sm:$0xf]
    %v41 = vld [vmem:[%s1 + $0x20] sm:$0xf]
    %v42 = vld [vmem:[%s1 + $0x24] sm:$0xf]
    %v43 = vld [vmem:[%s1 + $0x28] sm:$0xf]
    %v44 = vld [vmem:[%s1 + $0x2c] sm:$0xf]
    %v45 = vld [vmem:[%s1 + $0x30] sm:$0xf]
    %v46 = vld [vmem:[%s1 + $0x34] sm:$0xf]
    %v47 = vld [vmem:[%s1 + $0x38] sm:$0xf]
    %v48 = vld [vmem:[%s1 + $0x3c] sm:$0xf]
    %v49 = vld [vmem:[%s2] sm:$0xff]
    %v50 = vld [vmem:[%s2 + $0x8] sm:$0xff]
    %v51 = vld [vmem:[%s2 + $0x10] sm:$0xff]
    %v52 = vld [vmem:[%s2 + $0x18] sm:$0xff]
    %v53 = vld [vmem:[%s2 + $0x20] sm:$0xff]
    %v54 = vld [vmem:[%s2 + $0x28] sm:$0xff]
    %v55 = vld [vmem:[%s2 + $0x30] sm:$0xff]
    %v56 = vld [vmem:[%s2 + $0x38] sm:$0xff]
    %v57 = vld [vmem:[%s2 + $0x40] sm:$0xff]
    %v58 = vld [vmem:[%s2 + $0x48] sm:$0xff]
    %v59 = vld [vmem:[%s2 + $0x50] sm:$0xff]
    %v60 = vld [vmem:[%s2 + $0x58] sm:$0xff]
    %v61 = vld [vmem:[%s2 + $0x60] sm:$0xff]
    %v62 = vld [vmem:[%s2 + $0x68] sm:$0xff]
    %v63 = vld [vmem:[%s2 + $0x70] sm:$0xff]
    %v64 = vld [vmem:[%s2 + $0x78] sm:$0xff]
    %66 = vset.pattern.permute.xlu0 0
    %67 = vperm.xlu0 %66, %v49
    %v68 = vpop.permute.xlu0 %67
    %71 = vset.pattern.permute.xlu0 0
    %72 = vperm.xlu0 %71, %v50
    %v73 = vpop.permute.xlu0 %72
    %76 = vset.pattern.permute.xlu0 0
    %77 = vperm.xlu0 %76, %v51
    %v78 = vpop.permute.xlu0 %77
    %81 = vset.pattern.permute.xlu0 0
    %82 = vperm.xlu0 %81, %v52
    %v83 = vpop.permute.xlu0 %82
    %86 = vset.pattern.permute.xlu0 0
    %87 = vperm.xlu0 %86, %v53
    %v88 = vpop.permute.xlu0 %87
    %91 = vset.pattern.permute.xlu0 0
    %92 = vperm.xlu0 %91, %v54
    %v93 = vpop.permute.xlu0 %92
    %96 = vset.pattern.permute.xlu0 0
    %97 = vperm.xlu0 %96, %v55
    %v98 = vpop.permute.xlu0 %97
    %101 = vset.pattern.permute.xlu0 0
    %102 = vperm.xlu0 %101, %v56
    %v103 = vpop.permute.xlu0 %102
    %106 = vset.pattern.permute.xlu0 0
    %107 = vperm.xlu0 %106, %v57
    %v108 = vpop.permute.xlu0 %107
    %111 = vset.pattern.permute.xlu0 0
    %112 = vperm.xlu0 %111, %v58
    %v113 = vpop.permute.xlu0 %112
    %116 = vset.pattern.permute.xlu0 0
    %117 = vperm.xlu0 %116, %v59
    %v118 = vpop.permute.xlu0 %117
    %121 = vset.pattern.permute.xlu0 0
    %122 = vperm.xlu0 %121, %v60
    %v123 = vpop.permute.xlu0 %122
    %126 = vset.pattern.permute.xlu0 0
    %127 = vperm.xlu0 %126, %v61
    %v128 = vpop.permute.xlu0 %127
    %131 = vset.pattern.permute.xlu0 0
    %132 = vperm.xlu0 %131, %v62
    %v133 = vpop.permute.xlu0 %132
    %136 = vset.pattern.permute.xlu0 0
    %137 = vperm.xlu0 %136, %v63
    %v138 = vpop.permute.xlu0 %137
    %141 = vset.pattern.permute.xlu0 0
    %142 = vperm.xlu0 %141, %v64
    %v143 = vpop.permute.xlu0 %142
    %v161 = vunpack.c.l.b16 %v33
    %v162 = vunpack.c.l.b16 %v34
    %v163 = vunpack.c.l.b16 %v35
    %v164 = vunpack.c.l.b16 %v36
    %v165 = vunpack.c.l.b16 %v37
    %v166 = vunpack.c.l.b16 %v38
    %v167 = vunpack.c.l.b16 %v39
    %v168 = vunpack.c.l.b16 %v40
    %v169 = vunpack.c.l.b16 %v41
    %v170 = vunpack.c.l.b16 %v42
    %v171 = vunpack.c.l.b16 %v43
    %v172 = vunpack.c.l.b16 %v44
    %v173 = vunpack.c.l.b16 %v45
    %v174 = vunpack.c.l.b16 %v46
    %v175 = vunpack.c.l.b16 %v47
    %v176 = vunpack.c.l.b16 %v48
    %v177 = vpack.c.b16 %v162, %v161
    %v178 = vpack.c.b16 %v164, %v163
    %v179 = vpack.c.b16 %v166, %v165
    %v180 = vpack.c.b16 %v168, %v167
    %v181 = vpack.c.b16 %v170, %v169
    %v182 = vpack.c.b16 %v172, %v171
    %v183 = vpack.c.b16 %v174, %v173
    %v184 = vpack.c.b16 %v176, %v175
    %v189 = vunpack.c.l.b16 %v29
    %v190 = vunpack.c.h.b16 %v29
    %v191 = vunpack.c.l.b16 %v30
    %v192 = vunpack.c.h.b16 %v30
    %v193 = vunpack.c.l.b16 %v31
    %v194 = vunpack.c.h.b16 %v31
    %v195 = vunpack.c.l.b16 %v32
    %v196 = vunpack.c.h.b16 %v32
    %v197 = vpack.c.b16 %v191, %v189
    %v198 = vpack.c.b16 %v192, %v190
    %v199 = vpack.c.b16 %v195, %v193
    %v200 = vpack.c.b16 %v196, %v194
    %vm205 = vcmask 261120
    %v207 = vsel %vm205, %v177, 0
    %v210 = vsel %vm205, %v178, 0
    %v213 = vsel %vm205, %v179, 0
    %v216 = vsel %vm205, %v180, 0
    %v219 = vsel %vm205, %v181, 0
    %v222 = vsel %vm205, %v182, 0
    %v225 = vsel %vm205, %v183, 0
    %v228 = vsel %vm205, %v184, 0
    %230 = vmatpush.bf16.msra.mxu0 0
    %231 = vmatpush.bf16.msra.mxu0 0
    %232 = vmatpush.bf16.msra.mxu0 0
    %233 = vmatpush.bf16.msra.mxu0 0
    %234 = vmatpush.bf16.msra.mxu0 0
    %235 = vmatpush.bf16.msra.mxu0 0
    %236 = vmatpush.bf16.msra.mxu0 %v199
    %237 = vmatpush.bf16.msra.mxu0 %v197
    %238 = vmatmul.bf16.gmra.mxu0 %v207
    %v239 = vpop.f32.mrf.mxu0
    %v240 = vadd.f32 %v68, %v239
    %v241 = vpop.f32.mrf.mxu0
    %v242 = vadd.f32 %v73, %v241
    %243 = vmatmul.bf16.gmra.mxu0 %v210
    %v244 = vpop.f32.mrf.mxu0
    %v245 = vadd.f32 %v78, %v244
    %v246 = vpop.f32.mrf.mxu0
    %v247 = vadd.f32 %v83, %v246
    %248 = vmatmul.bf16.gmra.mxu0 %v213
    %v249 = vpop.f32.mrf.mxu0
    %v250 = vadd.f32 %v88, %v249
    %v251 = vpop.f32.mrf.mxu0
    %v252 = vadd.f32 %v93, %v251
    %253 = vmatmul.bf16.gmra.mxu0 %v216
    %v254 = vpop.f32.mrf.mxu0
    %v255 = vadd.f32 %v98, %v254
    %v256 = vpop.f32.mrf.mxu0
    %v257 = vadd.f32 %v103, %v256
    %258 = vmatmul.bf16.gmra.mxu0 %v219
    %v259 = vpop.f32.mrf.mxu0
    %v260 = vadd.f32 %v108, %v259
    %v261 = vpop.f32.mrf.mxu0
    %v262 = vadd.f32 %v113, %v261
    %263 = vmatmul.bf16.gmra.mxu0 %v222
    %v264 = vpop.f32.mrf.mxu0
    %v265 = vadd.f32 %v118, %v264
    %v266 = vpop.f32.mrf.mxu0
    %v267 = vadd.f32 %v123, %v266
    %268 = vmatmul.bf16.gmra.mxu0 %v225
    %v269 = vpop.f32.mrf.mxu0
    %v270 = vadd.f32 %v128, %v269
    %v271 = vpop.f32.mrf.mxu0
    %v272 = vadd.f32 %v133, %v271
    %273 = vmatmul.bf16.gmra.mxu0 %v228
    %v274 = vpop.f32.mrf.mxu0
    %v275 = vadd.f32 %v138, %v274
    %v276 = vpop.f32.mrf.mxu0
    %v277 = vadd.f32 %v143, %v276
    %278 = vdwg.mxu0
    %279 = vmatpush.bf16.msra.mxu0 0
    %280 = vmatpush.bf16.msra.mxu0 0
    %281 = vmatpush.bf16.msra.mxu0 0
    %282 = vmatpush.bf16.msra.mxu0 0
    %283 = vmatpush.bf16.msra.mxu0 0
    %284 = vmatpush.bf16.msra.mxu0 0
    %285 = vmatpush.bf16.msra.mxu0 %v200
    %286 = vmatpush.bf16.msra.mxu0 %v198
    %287 = vmatmul.bf16.gmra.mxu0 %v207
    %v288 = vpop.f32.mrf.mxu0
    %v289 = vadd.f32 %v68, %v288
    %v290 = vpop.f32.mrf.mxu0
    %v291 = vadd.f32 %v73, %v290
    %292 = vmatmul.bf16.gmra.mxu0 %v210
    %v293 = vpop.f32.mrf.mxu0
    %v294 = vadd.f32 %v78, %v293
    %v295 = vpop.f32.mrf.mxu0
    %v296 = vadd.f32 %v83, %v295
    %297 = vmatmul.bf16.gmra.mxu0 %v213
    %v298 = vpop.f32.mrf.mxu0
    %v299 = vadd.f32 %v88, %v298
    %v300 = vpop.f32.mrf.mxu0
    %v301 = vadd.f32 %v93, %v300
    %302 = vmatmul.bf16.gmra.mxu0 %v216
    %v303 = vpop.f32.mrf.mxu0
    %v304 = vadd.f32 %v98, %v303
    %v305 = vpop.f32.mrf.mxu0
    %v306 = vadd.f32 %v103, %v305
    %307 = vmatmul.bf16.gmra.mxu0 %v219
    %v308 = vpop.f32.mrf.mxu0
    %v309 = vadd.f32 %v108, %v308
    %v310 = vpop.f32.mrf.mxu0
    %v311 = vadd.f32 %v113, %v310
    %312 = vmatmul.bf16.gmra.mxu0 %v222
    %v313 = vpop.f32.mrf.mxu0
    %v314 = vadd.f32 %v118, %v313
    %v315 = vpop.f32.mrf.mxu0
    %v316 = vadd.f32 %v123, %v315
    %317 = vmatmul.bf16.gmra.mxu0 %v225
    %v318 = vpop.f32.mrf.mxu0
    %v319 = vadd.f32 %v128, %v318
    %v320 = vpop.f32.mrf.mxu0
    %v321 = vadd.f32 %v133, %v320
    %322 = vmatmul.bf16.gmra.mxu0 %v228
    %v323 = vpop.f32.mrf.mxu0
    %v324 = vadd.f32 %v138, %v323
    %v325 = vpop.f32.mrf.mxu0
    %v326 = vadd.f32 %v143, %v325
    %327 = vdwg.mxu0
    %v328 = vmax.f32 %v240, 0.0
    %v329 = vmax.f32 %v289, 0.0
    %v330 = vmax.f32 %v242, 0.0
    %v331 = vmax.f32 %v291, 0.0
    %v332 = vmax.f32 %v245, 0.0
    %v333 = vmax.f32 %v294, 0.0
    %v334 = vmax.f32 %v247, 0.0
    %v335 = vmax.f32 %v296, 0.0
    %v336 = vmax.f32 %v250, 0.0
    %v337 = vmax.f32 %v299, 0.0
    %v338 = vmax.f32 %v252, 0.0
    %v339 = vmax.f32 %v301, 0.0
    %v340 = vmax.f32 %v255, 0.0
    %v341 = vmax.f32 %v304, 0.0
    %v342 = vmax.f32 %v257, 0.0
    %v343 = vmax.f32 %v306, 0.0
    %v344 = vmax.f32 %v260, 0.0
    %v345 = vmax.f32 %v309, 0.0
    %v346 = vmax.f32 %v262, 0.0
    %v347 = vmax.f32 %v311, 0.0
    %v348 = vmax.f32 %v265, 0.0
    %v349 = vmax.f32 %v314, 0.0
    %v350 = vmax.f32 %v267, 0.0
    %v351 = vmax.f32 %v316, 0.0
    %v352 = vmax.f32 %v270, 0.0
    %v353 = vmax.f32 %v319, 0.0
    %v354 = vmax.f32 %v272, 0.0
    %v355 = vmax.f32 %v321, 0.0
    %v356 = vmax.f32 %v275, 0.0
    %v357 = vmax.f32 %v324, 0.0
    %v358 = vmax.f32 %v277, 0.0
    %v359 = vmax.f32 %v326, 0.0
    %v360 = vld [vmem:[%s3] sm:$0xf]
    %v361 = vld [vmem:[%s3 + $0x4] sm:$0xf]
    %v362 = vld [vmem:[%s3 + $0x8] sm:$0xf]
    %v363 = vld [vmem:[%s3 + $0xc] sm:$0xf]
    %v364 = vld [vmem:[%s3 + $0x10] sm:$0xf]
    %v365 = vld [vmem:[%s3 + $0x14] sm:$0xf]
    %v366 = vld [vmem:[%s3 + $0x18] sm:$0xf]
    %v367 = vld [vmem:[%s3 + $0x1c] sm:$0xf]
    %v368 = vpack.c.bf16 %v330, %v328
    %v369 = vpack.c.bf16 %v331, %v329
    %v370 = vpack.c.bf16 %v334, %v332
    %v371 = vpack.c.bf16 %v335, %v333
    %v372 = vpack.c.bf16 %v338, %v336
    %v373 = vpack.c.bf16 %v339, %v337
    %v374 = vpack.c.bf16 %v342, %v340
    %v375 = vpack.c.bf16 %v343, %v341
    %v376 = vpack.c.bf16 %v346, %v344
    %v377 = vpack.c.bf16 %v347, %v345
    %v378 = vpack.c.bf16 %v350, %v348
    %v379 = vpack.c.bf16 %v351, %v349
    %v380 = vpack.c.bf16 %v354, %v352
    %v381 = vpack.c.bf16 %v355, %v353
    %v382 = vpack.c.bf16 %v358, %v356
    %v383 = vpack.c.bf16 %v359, %v357
    %v384 = vld [vmem:[%s4] sm:$0xff]
    %v385 = vld [vmem:[%s4 + $0x8] sm:$0xff]
    %v386 = vld [vmem:[%s4 + $0x10] sm:$0xff]
    %v387 = vld [vmem:[%s4 + $0x18] sm:$0xff]
    %v388 = vld [vmem:[%s4 + $0x20] sm:$0xff]
    %v389 = vld [vmem:[%s4 + $0x28] sm:$0xff]
    %v390 = vld [vmem:[%s4 + $0x30] sm:$0xff]
    %v391 = vld [vmem:[%s4 + $0x38] sm:$0xff]
    %393 = vset.pattern.permute.xlu0 0
    %394 = vperm.xlu0 %393, %v384
    %v395 = vpop.permute.xlu0 %394
    %398 = vset.pattern.permute.xlu0 0
    %399 = vperm.xlu0 %398, %v385
    %v400 = vpop.permute.xlu0 %399
    %403 = vset.pattern.permute.xlu0 0
    %404 = vperm.xlu0 %403, %v386
    %v405 = vpop.permute.xlu0 %404
    %408 = vset.pattern.permute.xlu0 0
    %409 = vperm.xlu0 %408, %v387
    %v410 = vpop.permute.xlu0 %409
    %413 = vset.pattern.permute.xlu0 0
    %414 = vperm.xlu0 %413, %v388
    %v415 = vpop.permute.xlu0 %414
    %418 = vset.pattern.permute.xlu0 0
    %419 = vperm.xlu0 %418, %v389
    %v420 = vpop.permute.xlu0 %419
    %423 = vset.pattern.permute.xlu0 0
    %424 = vperm.xlu0 %423, %v390
    %v425 = vpop.permute.xlu0 %424
    %428 = vset.pattern.permute.xlu0 0
    %429 = vperm.xlu0 %428, %v391
    %v430 = vpop.permute.xlu0 %429
    %v440 = vunpack.c.l.b16 %v360
    %v441 = vunpack.c.l.b16 %v361
    %v442 = vunpack.c.l.b16 %v362
    %v443 = vunpack.c.l.b16 %v363
    %v444 = vunpack.c.l.b16 %v364
    %v445 = vunpack.c.l.b16 %v365
    %v446 = vunpack.c.l.b16 %v366
    %v447 = vunpack.c.l.b16 %v367
    %v448 = vpack.c.b16 %v441, %v440
    %v449 = vpack.c.b16 %v443, %v442
    %v450 = vpack.c.b16 %v445, %v444
    %v451 = vpack.c.b16 %v447, %v446
    %456 = vmatpush.bf16.msra.mxu0 %v382
    %457 = vmatpush.bf16.msra.mxu0 %v380
    %458 = vmatpush.bf16.msra.mxu0 %v378
    %459 = vmatpush.bf16.msra.mxu0 %v376
    %460 = vmatpush.bf16.msra.mxu0 %v374
    %461 = vmatpush.bf16.msra.mxu0 %v372
    %462 = vmatpush.bf16.msra.mxu0 %v370
    %463 = vmatpush.bf16.msra.mxu0 %v368
    %464 = vmatmul.bf16.gmra.mxu0 %v448
    %v465 = vpop.f32.mrf.mxu0
    %v466 = vadd.f32 %v395, %v465
    %v467 = vpop.f32.mrf.mxu0
    %v468 = vadd.f32 %v400, %v467
    %469 = vmatmul.bf16.gmra.mxu0 %v449
    %v470 = vpop.f32.mrf.mxu0
    %v471 = vadd.f32 %v405, %v470
    %v472 = vpop.f32.mrf.mxu0
    %v473 = vadd.f32 %v410, %v472
    %474 = vmatmul.bf16.gmra.mxu0 %v450
    %v475 = vpop.f32.mrf.mxu0
    %v476 = vadd.f32 %v415, %v475
    %v477 = vpop.f32.mrf.mxu0
    %v478 = vadd.f32 %v420, %v477
    %479 = vmatmul.bf16.gmra.mxu0 %v451
    %v480 = vpop.f32.mrf.mxu0
    %v481 = vadd.f32 %v425, %v480
    %v482 = vpop.f32.mrf.mxu0
    %v483 = vadd.f32 %v430, %v482
    %484 = vdwg.mxu0
    %485 = vmatpush.bf16.msra.mxu0 %v383
    %486 = vmatpush.bf16.msra.mxu0 %v381
    %487 = vmatpush.bf16.msra.mxu0 %v379
    %488 = vmatpush.bf16.msra.mxu0 %v377
    %489 = vmatpush.bf16.msra.mxu0 %v375
    %490 = vmatpush.bf16.msra.mxu0 %v373
    %491 = vmatpush.bf16.msra.mxu0 %v371
    %492 = vmatpush.bf16.msra.mxu0 %v369
    %493 = vmatmul.bf16.gmra.mxu0 %v448
    %v494 = vpop.f32.mrf.mxu0
    %v495 = vadd.f32 %v395, %v494
    %v496 = vpop.f32.mrf.mxu0
    %v497 = vadd.f32 %v400, %v496
    %498 = vmatmul.bf16.gmra.mxu0 %v449
    %v499 = vpop.f32.mrf.mxu0
    %v500 = vadd.f32 %v405, %v499
    %v501 = vpop.f32.mrf.mxu0
    %v502 = vadd.f32 %v410, %v501
    %503 = vmatmul.bf16.gmra.mxu0 %v450
    %v504 = vpop.f32.mrf.mxu0
    %v505 = vadd.f32 %v415, %v504
    %v506 = vpop.f32.mrf.mxu0
    %v507 = vadd.f32 %v420, %v506
    %508 = vmatmul.bf16.gmra.mxu0 %v451
    %v509 = vpop.f32.mrf.mxu0
    %v510 = vadd.f32 %v425, %v509
    %v511 = vpop.f32.mrf.mxu0
    %v512 = vadd.f32 %v430, %v511
    %513 = vdwg.mxu0
    %v514 = vmax.f32 %v466, 0.0
    %v515 = vmax.f32 %v495, 0.0
    %v516 = vmax.f32 %v468, 0.0
    %v517 = vmax.f32 %v497, 0.0
    %v518 = vmax.f32 %v471, 0.0
    %v519 = vmax.f32 %v500, 0.0
    %v520 = vmax.f32 %v473, 0.0
    %v521 = vmax.f32 %v502, 0.0
    %v522 = vmax.f32 %v476, 0.0
    %v523 = vmax.f32 %v505, 0.0
    %v524 = vmax.f32 %v478, 0.0
    %v525 = vmax.f32 %v507, 0.0
    %v526 = vmax.f32 %v481, 0.0
    %v527 = vmax.f32 %v510, 0.0
    %v528 = vmax.f32 %v483, 0.0
    %v529 = vmax.f32 %v512, 0.0
    %v530 = vld [vmem:[%s5] sm:$0xff]
    %v531 = vld [vmem:[%s5 + $0x8] sm:$0xff]
    %v532 = vld [vmem:[%s5 + $0x10] sm:$0xff]
    %v533 = vld [vmem:[%s5 + $0x18] sm:$0xff]
    %v534 = vld [vmem:[%s5 + $0x20] sm:$0xff]
    %v535 = vld [vmem:[%s5 + $0x28] sm:$0xff]
    %v536 = vld [vmem:[%s5 + $0x30] sm:$0xff]
    %v537 = vld [vmem:[%s5 + $0x38] sm:$0xff]
    %539 = vset.pattern.permute.xlu0 0
    %540 = vperm.xlu0 %539, %v530
    %v541 = vpop.permute.xlu0 %540
    %544 = vset.pattern.permute.xlu0 0
    %545 = vperm.xlu0 %544, %v531
    %v546 = vpop.permute.xlu0 %545
    %549 = vset.pattern.permute.xlu0 0
    %550 = vperm.xlu0 %549, %v532
    %v551 = vpop.permute.xlu0 %550
    %554 = vset.pattern.permute.xlu0 0
    %555 = vperm.xlu0 %554, %v533
    %v556 = vpop.permute.xlu0 %555
    %559 = vset.pattern.permute.xlu0 0
    %560 = vperm.xlu0 %559, %v534
    %v561 = vpop.permute.xlu0 %560
    %564 = vset.pattern.permute.xlu0 0
    %565 = vperm.xlu0 %564, %v535
    %v566 = vpop.permute.xlu0 %565
    %569 = vset.pattern.permute.xlu0 0
    %570 = vperm.xlu0 %569, %v536
    %v571 = vpop.permute.xlu0 %570
    %574 = vset.pattern.permute.xlu0 0
    %575 = vperm.xlu0 %574, %v537
    %v576 = vpop.permute.xlu0 %575
    %v578 = vmul.f32 %v514, %v541
    %v579 = vmul.f32 %v515, %v541
    %v580 = vmul.f32 %v516, %v546
    %v581 = vmul.f32 %v517, %v546
    %v582 = vmul.f32 %v518, %v551
    %v583 = vmul.f32 %v519, %v551
    %v584 = vmul.f32 %v520, %v556
    %v585 = vmul.f32 %v521, %v556
    %v586 = vmul.f32 %v522, %v561
    %v587 = vmul.f32 %v523, %v561
    %v588 = vmul.f32 %v524, %v566
    %v589 = vmul.f32 %v525, %v566
    %v590 = vmul.f32 %v526, %v571
    %v591 = vmul.f32 %v527, %v571
    %v592 = vmul.f32 %v528, %v576
    %v593 = vmul.f32 %v529, %v576
    %v594 = vadd.f32 %v578, %v580
    %v595 = vadd.f32 %v594, %v582
    %v596 = vadd.f32 %v595, %v584
    %v597 = vadd.f32 %v596, %v586
    %v598 = vadd.f32 %v597, %v588
    %v599 = vadd.f32 %v598, %v590
    %v600 = vadd.f32 %v599, %v592
    %v601 = vrot.slane %v600, 4
    %v602 = vadd.f32 %v600, %v601
    %v603 = vrot.slane %v602, 2
    %v604 = vadd.f32 %v602, %v603
    %v605 = vrot.slane %v604, 1
    %v606 = vadd.f32 %v604, %v605
    %v607 = vadd.f32 %v579, %v581
    %v608 = vadd.f32 %v607, %v583
    %v609 = vadd.f32 %v608, %v585
    %v610 = vadd.f32 %v609, %v587
    %v611 = vadd.f32 %v610, %v589
    %v612 = vadd.f32 %v611, %v591
    %v613 = vadd.f32 %v612, %v593
    %v614 = vrot.slane %v613, 4
    %v615 = vadd.f32 %v613, %v614
    %v616 = vrot.slane %v615, 2
    %v617 = vadd.f32 %v615, %v616
    %v618 = vrot.slane %v617, 1
    %v619 = vadd.f32 %v617, %v618
    %s620 = sld [smem:[#allocation2]]
    %v621 = vstv %s620
    %v622 = vadd.f32 %v606, %v621
    %v623 = vadd.f32 %v619, %v621
    %v626 = vrot.slane %v623, 7
    %vm627 = vcmask 1040384
    %v628 = vsel %vm627, %v622, %v626
    %v630 = vlaneseq
    %vm631 = vcmp.ge.s32.totalorder %v630, 0
    %vm632 = vcmp.lt.s32.totalorder %v630, 256
    %vm633 = vmand %vm631, %vm632
    %634 = vst.msk [vmem:[#allocation3] sm:$0x3] %vm633, %v628
    // Predicated region
    $region30: #{tpu_custom_call.1} parent=1 // pred_check
      _
    $region31: #{tpu_custom_call.1} parent=1 // pred_check_branch
      %636 = sbr.rel (0) target = $region33
    $region32: #{tpu_custom_call.1} parent=1 // pred_region
      %638 = vsyncadd [#allocation4], 0
      %s640 = sshll.u32 [#allocation3], 4
      %s641 = int_to_ptr.vmem [resolvable:$true] %s640
      %s642 = sshll.u32 %s7, 4
      %s643 = int_to_ptr.hbm [resolvable:$true] %s642
      %645 = dma.vmem_to_hbm [thread:$0]  %s641, 32, %s643, [#allocation4]
    $region33: #{tpu_custom_call.1} parent=1 // pred_fallthru
      _
    // Predicated region
    $region34: #{tpu_custom_call.1} parent=1 // pred_check
      _
    $region35: #{tpu_custom_call.1} parent=1 // pred_check_branch
      %647 = sbr.rel (0) target = $region37
    $region36: #{tpu_custom_call.1} parent=1 // pred_region
      %649 = dma.done [#allocation4], 32
    $region37: #{tpu_custom_call.1} parent=1 // pred_fallthru
      _
    %650 = vsyncpa [#allocation4], 1

</llo_original>
